<compile_context>
chip_gen: v5e
topology: v5e:2x2
jax: 0.10.0
libtpu: 0.0.40
codegen_flags: <defaults>
</compile_context>

<pallas_src>
import functools
import math

import jax
import jax.numpy as jnp
from jax.experimental import pallas as pl
from jax.experimental.pallas import tpu as pltpu

UPPER = 255.0  # `self.upper` in the PyTorch module


def _conv_wso_kernel(x_ref, w_ref, b_ref, o_ref, *, act_fn):
    # x_ref: (1, t_s, L)               VMEM tile of the single-channel image
    # w_ref: (n_windows,)              SMEM (squeezed 1x1 conv weight)
    # b_ref: (n_windows,)              SMEM (conv bias)
    # o_ref: (1, n_windows, t_s, L)    VMEM output tile (contiguous NCHW view)
    x = x_ref[0].astype(jnp.float32)          # (t_s, L), read once, reused
    n_windows = o_ref.shape[1]
    for c in range(n_windows):                # tiny static loop over windows
        y = x * w_ref[c] + b_ref[c]           # 1x1 conv with C_in == 1 (VPU)
        if act_fn == "sigmoid":
            out = UPPER * jax.nn.sigmoid(y)   # exp lands on the EUP slot
        else:                                 # "relu"
            out = jnp.minimum(jnp.maximum(y, 0.0), UPPER)
        o_ref[0, c, :, :] = out.astype(o_ref.dtype)   # lane-dense, unmasked vst


def _pick_sublane_tile(s, n_batch, cap=1024):
    """Largest multiple-of-8 divisor of s that is <= cap (or s itself).

    When there is only one image in the batch, halve the cap so the grid has
    at least two independent steps (megacore / dual-TC utilization).
    """
    if n_batch == 1:
        cap = min(cap, max(8, s // 2))
    if s <= cap:
        return s
    t = cap - cap % 8
    while t >= 8:
        if s % t == 0:
            return t
        t -= 8
    return s


@functools.partial(jax.jit, static_argnames=("act_fn",))
def conv_wso(x_nchw, weight, bias, *, act_fn="sigmoid"):
    """x_nchw: [N, 1, H, W]; weight: [n_windows] or [n_windows,1,1,1]; bias: [n_windows].
    Returns [N, n_windows, H, W]."""
    N, C_in, H, W = x_nchw.shape
    assert C_in == 1, "ConvWSO takes a single-channel CT image"
    weight = weight.reshape(-1)               # accept full conv weight shape too
    bias = bias.reshape(-1)
    n_windows = weight.shape[0]
    HW = H * W

    if HW % 128 == 0:          # lane-dense fast path (every real CT size: 512*512 etc.)
        L, S = 128, HW // 128
    else:                      # fall back: whole row on the lane axis (masked stores)
        L, S = HW, 1
    t_s = _pick_sublane_tile(S, N)

    # Pure reshapes only (C_in == 1): NCHW stays NCHW, no HBM transpose ops.
    x_view = x_nchw.reshape(N, S, L)

    out = pl.pallas_call(
        functools.partial(_conv_wso_kernel, act_fn=act_fn),
        out_shape=jax.ShapeDtypeStruct((N, n_windows, S, L), x_nchw.dtype),
        grid=(N, S // t_s),
        in_specs=[
            pl.BlockSpec((1, t_s, L), lambda n, j: (n, j, 0)),
            pl.BlockSpec(memory_space=pltpu.MemorySpace.SMEM),
            pl.BlockSpec(memory_space=pltpu.MemorySpace.SMEM),
        ],
        out_specs=pl.BlockSpec((1, n_windows, t_s, L),
                               lambda n, j: (n, 0, j, 0)),
        compiler_params=pltpu.CompilerParams(
            dimension_semantics=("parallel", "parallel")),
    )(x_view, weight.astype(jnp.float32), bias.astype(jnp.float32))

    return out.reshape(N, n_windows, H, W)


def _reference(x_nchw, weight, bias, *, act_fn="sigmoid"):
    # Pure-JAX mirror of the PyTorch forward (1x1 conv with C_in=1 + activation).
    y = x_nchw * weight.reshape(1, -1, 1, 1) + bias.reshape(1, -1, 1, 1)
    if act_fn == "sigmoid":
        return UPPER * jax.nn.sigmoid(y)
    return jnp.minimum(jnp.maximum(y, 0.0), UPPER)


if __name__ == "__main__":
    # Typical CT windows (WL=level, WW=width): brain / subdural / bone.
    WL = jnp.array([40.0, 80.0, 600.0], dtype=jnp.float32)
    WW = jnp.array([80.0, 200.0, 2000.0], dtype=jnp.float32)
    n_windows = WL.shape[0]

    N, H, W = 2, 16, 16
    key = jax.random.PRNGKey(0)
    x = jax.random.uniform(key, (N, 1, H, W), minval=-1024.0, maxval=2000.0,
                           dtype=jnp.float32)  # HU-like CT values

    log_u = math.log(UPPER - 1.0)

    # --- sigmoid variant (module default), init_weights() formulas ---
    w_sig = 2.0 / WW * log_u
    b_sig = -2.0 * WL / WW * log_u
    out = conv_wso(x, w_sig, b_sig, act_fn="sigmoid")
    out = jax.block_until_ready(out)
    ref = _reference(x, w_sig, b_sig, act_fn="sigmoid")
    assert out.shape == (N, n_windows, H, W)
    assert jnp.allclose(out, ref, atol=1e-3, rtol=1e-5), "sigmoid mismatch"

    # --- relu variant ---
    w_rel = UPPER / WW
    b_rel = -UPPER * (WL - WW / 2.0) / WW
    out_r = conv_wso(x, w_rel, b_rel, act_fn="relu")
    out_r = jax.block_until_ready(out_r)
    ref_r = _reference(x, w_rel, b_rel, act_fn="relu")
    assert jnp.allclose(out_r, ref_r, atol=1e-3, rtol=1e-5), "relu mismatch"

    print("KERNEL_OK")
</pallas_src>

<mosaic_0001>
module attributes {stable_mosaic.version = 11 : i64} {
  func.func @_conv_wso_kernel(%arg0: i32, %arg1: i32, %arg2: memref<1x2x128xf32, #tpu.memory_space<vmem>>, %arg3: memref<3xf32, #tpu.memory_space<smem>>, %arg4: memref<3xf32, #tpu.memory_space<smem>>, %arg5: memref<1x3x2x128xf32, #tpu.memory_space<vmem>>) attributes {dimension_semantics = [#tpu.dimension_semantics<parallel>, #tpu.dimension_semantics<parallel>], iteration_bounds = array<i64: 2, 1>, scalar_prefetch = 0 : i64, scratch_operands = 0 : i64, tpu.core_type = #tpu.core_type<tc>, window_params = [{transform_indices = @transform_0, window_bounds = array<i64: 1, 2, 128>}, {transform_indices = @transform_1, window_bounds = array<i64: 3>}, {transform_indices = @transform_2, window_bounds = array<i64: 3>}, {transform_indices = @transform_3, window_bounds = array<i64: 1, 3, 2, 128>}]} {
    %c0 = arith.constant 0 : index
    %c0_0 = arith.constant 0 : index
    %c0_1 = arith.constant 0 : index
    %0 = vector.load %arg2[%c0, %c0_0, %c0_1] : memref<1x2x128xf32, #tpu.memory_space<vmem>>, vector<1x2x128xf32>
    %1 = vector.shape_cast %0 : vector<1x2x128xf32> to vector<2x128xf32>
    %c0_2 = arith.constant 0 : index
    %2 = memref.load %arg3[%c0_2] : memref<3xf32, #tpu.memory_space<smem>>
    %3 = vector.broadcast %2 : f32 to vector<2x128xf32>
    %4 = arith.mulf %1, %3 : vector<2x128xf32>
    %c0_3 = arith.constant 0 : index
    %5 = memref.load %arg4[%c0_3] : memref<3xf32, #tpu.memory_space<smem>>
    %6 = vector.broadcast %5 : f32 to vector<2x128xf32>
    %7 = arith.addf %4, %6 : vector<2x128xf32>
    %8 = arith.negf %7 : vector<2x128xf32>
    %9 = math.exp %8 : vector<2x128xf32>
    %cst = arith.constant 1.000000e+00 : f32
    %10 = vector.broadcast %cst : f32 to vector<2x128xf32>
    %11 = arith.addf %10, %9 : vector<2x128xf32>
    %12 = arith.divf %10, %11 : vector<2x128xf32>
    %cst_4 = arith.constant 2.550000e+02 : f32
    %13 = vector.broadcast %cst_4 : f32 to vector<2x128xf32>
    %14 = arith.mulf %13, %12 : vector<2x128xf32>
    %c0_5 = arith.constant 0 : index
    %c0_6 = arith.constant 0 : index
    %c0_7 = arith.constant 0 : index
    %c0_8 = arith.constant 0 : index
    %15 = vector.load %arg5[%c0_5, %c0_6, %c0_7, %c0_8] : memref<1x3x2x128xf32, #tpu.memory_space<vmem>>, vector<1x1x2x128xf32>
    %16 = vector.shape_cast %15 : vector<1x1x2x128xf32> to vector<2x128xf32>
    %17 = vector.shape_cast %14 : vector<2x128xf32> to vector<1x1x2x128xf32>
    tpu.vector_store %arg5[%c0_5, %c0_6, %c0_7, %c0_8], %17 {strides = array<i32>} : memref<1x3x2x128xf32, #tpu.memory_space<vmem>>, vector<1x1x2x128xf32>,
    %c1 = arith.constant 1 : index
    %18 = memref.load %arg3[%c1] : memref<3xf32, #tpu.memory_space<smem>>
    %19 = vector.broadcast %18 : f32 to vector<2x128xf32>
    %20 = arith.mulf %1, %19 : vector<2x128xf32>
    %c1_9 = arith.constant 1 : index
    %21 = memref.load %arg4[%c1_9] : memref<3xf32, #tpu.memory_space<smem>>
    %22 = vector.broadcast %21 : f32 to vector<2x128xf32>
    %23 = arith.addf %20, %22 : vector<2x128xf32>
    %24 = arith.negf %23 : vector<2x128xf32>
    %25 = math.exp %24 : vector<2x128xf32>
    %cst_10 = arith.constant 1.000000e+00 : f32
    %26 = vector.broadcast %cst_10 : f32 to vector<2x128xf32>
    %27 = arith.addf %26, %25 : vector<2x128xf32>
    %28 = arith.divf %26, %27 : vector<2x128xf32>
    %cst_11 = arith.constant 2.550000e+02 : f32
    %29 = vector.broadcast %cst_11 : f32 to vector<2x128xf32>
    %30 = arith.mulf %29, %28 : vector<2x128xf32>
    %c0_12 = arith.constant 0 : index
    %c1_13 = arith.constant 1 : index
    %c0_14 = arith.constant 0 : index
    %c0_15 = arith.constant 0 : index
    %31 = vector.load %arg5[%c0_12, %c1_13, %c0_14, %c0_15] : memref<1x3x2x128xf32, #tpu.memory_space<vmem>>, vector<1x1x2x128xf32>
    %32 = vector.shape_cast %31 : vector<1x1x2x128xf32> to vector<2x128xf32>
    %33 = vector.shape_cast %30 : vector<2x128xf32> to vector<1x1x2x128xf32>
    tpu.vector_store %arg5[%c0_12, %c1_13, %c0_14, %c0_15], %33 {strides = array<i32>} : memref<1x3x2x128xf32, #tpu.memory_space<vmem>>, vector<1x1x2x128xf32>,
    %c2 = arith.constant 2 : index
    %34 = memref.load %arg3[%c2] : memref<3xf32, #tpu.memory_space<smem>>
    %35 = vector.broadcast %34 : f32 to vector<2x128xf32>
    %36 = arith.mulf %1, %35 : vector<2x128xf32>
    %c2_16 = arith.constant 2 : index
    %37 = memref.load %arg4[%c2_16] : memref<3xf32, #tpu.memory_space<smem>>
    %38 = vector.broadcast %37 : f32 to vector<2x128xf32>
    %39 = arith.addf %36, %38 : vector<2x128xf32>
    %40 = arith.negf %39 : vector<2x128xf32>
    %41 = math.exp %40 : vector<2x128xf32>
    %cst_17 = arith.constant 1.000000e+00 : f32
    %42 = vector.broadcast %cst_17 : f32 to vector<2x128xf32>
    %43 = arith.addf %42, %41 : vector<2x128xf32>
    %44 = arith.divf %42, %43 : vector<2x128xf32>
    %cst_18 = arith.constant 2.550000e+02 : f32
    %45 = vector.broadcast %cst_18 : f32 to vector<2x128xf32>
    %46 = arith.mulf %45, %44 : vector<2x128xf32>
    %c0_19 = arith.constant 0 : index
    %c2_20 = arith.constant 2 : index
    %c0_21 = arith.constant 0 : index
    %c0_22 = arith.constant 0 : index
    %47 = vector.load %arg5[%c0_19, %c2_20, %c0_21, %c0_22] : memref<1x3x2x128xf32, #tpu.memory_space<vmem>>, vector<1x1x2x128xf32>
    %48 = vector.shape_cast %47 : vector<1x1x2x128xf32> to vector<2x128xf32>
    %49 = vector.shape_cast %46 : vector<2x128xf32> to vector<1x1x2x128xf32>
    tpu.vector_store %arg5[%c0_19, %c2_20, %c0_21, %c0_22], %49 {strides = array<i32>} : memref<1x3x2x128xf32, #tpu.memory_space<vmem>>, vector<1x1x2x128xf32>,
    return
  }
  func.func @transform_0(%arg0: i32, %arg1: i32) -> (i32, i32, i32) {
    %c0_i32 = arith.constant 0 : i32
    %c0_i32_0 = arith.constant 0 : i32
    return %arg0, %arg1, %c0_i32 : i32, i32, i32
  }
  func.func @transform_1(%arg0: i32, %arg1: i32) -> i32 {
    %c0_i32 = arith.constant 0 : i32
    %c0_i32_0 = arith.constant 0 : i32
    return %c0_i32 : i32
  }
  func.func @transform_2(%arg0: i32, %arg1: i32) -> i32 {
    %c0_i32 = arith.constant 0 : i32
    %c0_i32_0 = arith.constant 0 : i32
    return %c0_i32 : i32
  }
  func.func @transform_3(%arg0: i32, %arg1: i32) -> (i32, i32, i32, i32) {
    %c0_i32 = arith.constant 0 : i32
    %c0_i32_0 = arith.constant 0 : i32
    %c0_i32_1 = arith.constant 0 : i32
    return %arg0, %c0_i32, %arg1, %c0_i32_0 : i32, i32, i32, i32
  }
}

</mosaic_0001>

<llo_original>
// kernel: conv_wso.1
$region0: #{conv_wso.1}
  #allocation0 [shape = 'u32[]', space=smem, size = 0x4, offset = 0x4, fixed_abs, tag = 'smem constant byte address 0x4 - core index']
  #allocation1 [shape = 'u32[72,128]{1,0:T(1,128)}', space=vmem, size = 0x9000, scoped, tag = 'internal scratch']
  %s0 = inlined_call_operand.vmem [shape: f32[2,2,128], index: 0, kind: input, shape index: {}]
  %s1 = inlined_call_operand.vmem [shape: f32[3], index: 1, kind: input, shape index: {}]
  %s2 = inlined_call_operand.vmem [shape: f32[3], index: 2, kind: input, shape index: {}]
  %s3 = inlined_call_operand.vmem [shape: f32[2,3,2,128], index: 3, kind: output, shape index: {}]
  %s4 = sld [smem:[#allocation0]]
  $region53: #{conv_wso.1} parent=0
    _
  %s6 = ssub.s32 1, %s4
  %s7 = scalar_select 0, %s6, %s4
  $region1: #{conv_wso.1} parent=0
    #allocation2 [shape = 'u8[512]{0}', space=smem, size = 0x200, scoped, tag = 'input window, operand 1, single buffered']
    #allocation3 [shape = 's32[2]{0}', space=sflag, size = 0x8, scoped, tag = 'scoped memory for conv_wso.1']
    #allocation4 [shape = 'u8[512]{0}', space=smem, size = 0x200, scoped, tag = 'input window, operand 2, single buffered']
    #allocation5 [shape = 's32[1]{0}', space=sflag, size = 0x4, scoped, tag = 'scoped memory for conv_wso.1']
    %8 = vsyncpa [#allocation3], 0
    %9 = vsyncpa [#allocation5], 0
    loop: start=0, step=1, limit=4
    $region2: #{conv_wso.1} parent=1 // loop_pre_header
      _
    $region3: #{conv_wso.1} parent=1 // loop_header
      %s11 = sphi 0, %s15
      %p12 = scmp.ge.s32.totalorder %s11, 4
      %s18 = sphi 0, %s30
      %s19 = sphi 0, %s26
      %s20 = sphi 0, %s18
      %s21 = sphi 0, %s19
      %s22 = sphi 0, %s20
      %s23 = sphi 0, %s21
      %s35 = sphi 0, %s37
      %s38 = sphi 0, %s35
      %s39 = sphi 0, %s38
      %s55 = sphi 0, %s39
      %s59 = sphi 0, %s59
      %s61 = sphi 0, %s59
      %s62 = sphi 0, %s61
      %s76 = sphi 0, %s62
      %s80 = sphi 0, %s80
      %s82 = sphi 0, %s80
      %s83 = sphi 0, %s82
      %s97 = sphi 0, %s83
      %s105 = sphi 0, %s107
      %s108 = sphi 0, %s105
      %s109 = sphi 0, %s108
      %s125 = sphi 0, %s109
    $region4: #{conv_wso.1} parent=1 // loop_header_branch
      %14 = sbr.rel (%p12) target = $region8
    $region5: #{conv_wso.1} parent=1 // loop_body
      %s16 = ssub.s32 %s11, 1
      %s17 = ssub.s32 %s11, 2
      %s24 = sadd.s32 1, %s19
      %p25 = scmp.ge.s32.totalorder %s24, 1
      %s26 = scalar_select %p25, 0, %s24
      %s27 = sadd.s32 1, %s18
      %s28 = scalar_select %p25, %s27, %s18
      %p29 = scmp.ge.s32.totalorder %s28, 2
      %s30 = scalar_select %p29, 0, %s28
      %s31 = ssub.s32 %s18, %s30
      %s32 = ssub.s32 %s19, %s26
      %s33 = sor.u32 %s31, %s32
      %p34 = scmp.eq.s32.totalorder %s33, 0
      %s36 = sadd.s32 %s35, 1
      %s37 = scalar_select %p34, %s35, %s36
      %p40 = pneg %p34
      %p41 = scmp.eq.s32.totalorder %s11, 1
      %p42 = por %p40, %p41
      %p43 = scmp.ne.s32.totalorder %s35, %s38
      %p44 = scmp.eq.s32.totalorder %s11, 0
      %p45 = por %p43, %p44
      %p46 = scmp.ne.s32.totalorder %s35, %s38
      %p47 = scmp.eq.s32.totalorder %s16, 1
      %p48 = por %p46, %p47
      %p49 = scmp.ne.s32.totalorder %s38, %s39
      %p50 = scmp.eq.s32.totalorder %s16, 0
      %p51 = por %p49, %p50
      %p52 = scmp.ne.s32.totalorder %s38, %s39
      %p53 = scmp.eq.s32.totalorder %s17, 1
      %p54 = por %p52, %p53
      %p56 = scmp.ne.s32.totalorder %s39, %s55
      %p57 = scmp.eq.s32.totalorder %s17, 0
      %p58 = por %p56, %p57
      %s60 = sadd.s32 %s59, 1
      %p63 = scmp.eq.s32.totalorder %s11, 1
      %p64 = scmp.ne.s32.totalorder %s59, %s61
      %p65 = scmp.eq.s32.totalorder %s11, 0
      %p66 = por %p64, %p65
      %p67 = scmp.ne.s32.totalorder %s59, %s61
      %p68 = scmp.eq.s32.totalorder %s16, 1
      %p69 = por %p67, %p68
      %p70 = scmp.ne.s32.totalorder %s61, %s62
      %p71 = scmp.eq.s32.totalorder %s16, 0
      %p72 = por %p70, %p71
      %p73 = scmp.ne.s32.totalorder %s61, %s62
      %p74 = scmp.eq.s32.totalorder %s17, 1
      %p75 = por %p73, %p74
      %p77 = scmp.ne.s32.totalorder %s62, %s76
      %p78 = scmp.eq.s32.totalorder %s17, 0
      %p79 = por %p77, %p78
      %s81 = sadd.s32 %s80, 1
      %p84 = scmp.eq.s32.totalorder %s11, 1
      %p85 = scmp.ne.s32.totalorder %s80, %s82
      %p86 = scmp.eq.s32.totalorder %s11, 0
      %p87 = por %p85, %p86
      %p88 = scmp.ne.s32.totalorder %s80, %s82
      %p89 = scmp.eq.s32.totalorder %s16, 1
      %p90 = por %p88, %p89
      %p91 = scmp.ne.s32.totalorder %s82, %s83
      %p92 = scmp.eq.s32.totalorder %s16, 0
      %p93 = por %p91, %p92
      %p94 = scmp.ne.s32.totalorder %s82, %s83
      %p95 = scmp.eq.s32.totalorder %s17, 1
      %p96 = por %p94, %p95
      %p98 = scmp.ne.s32.totalorder %s83, %s97
      %p99 = scmp.eq.s32.totalorder %s17, 0
      %p100 = por %p98, %p99
      %s101 = ssub.s32 %s18, %s30
      %s102 = ssub.s32 %s19, %s26
      %s103 = sor.u32 %s101, %s102
      %p104 = scmp.eq.s32.totalorder %s103, 0
      %s106 = sadd.s32 %s105, 1
      %s107 = scalar_select %p104, %s105, %s106
      %p110 = pneg %p104
      %p111 = scmp.eq.s32.totalorder %s11, 1
      %p112 = por %p110, %p111
      %p113 = scmp.ne.s32.totalorder %s105, %s108
      %p114 = scmp.eq.s32.totalorder %s11, 0
      %p115 = por %p113, %p114
      %p116 = scmp.ne.s32.totalorder %s105, %s108
      %p117 = scmp.eq.s32.totalorder %s16, 1
      %p118 = por %p116, %p117
      %p119 = scmp.ne.s32.totalorder %s108, %s109
      %p120 = scmp.eq.s32.totalorder %s16, 0
      %p121 = por %p119, %p120
      %p122 = scmp.ne.s32.totalorder %s108, %s109
      %p123 = scmp.eq.s32.totalorder %s17, 1
      %p124 = por %p122, %p123
      %p126 = scmp.ne.s32.totalorder %s109, %s125
      %p127 = scmp.eq.s32.totalorder %s17, 0
      %p128 = por %p126, %p127
      %p129 = scmp.le.s32.totalorder 1, %s11
      %p130 = scmp.lt.s32.totalorder %s11, 3
      %p131 = pnand %p129, %p130
      %p132 = pneg %p131
      // Predicated region
      $region9: #{conv_wso.1} parent=5 // pred_check
        _
      $region10: #{conv_wso.1} parent=5 // pred_check_branch
        %134 = sbr.rel (%p131) target = $region12
      $region11: #{conv_wso.1} parent=5 // pred_region
        %s135 = ssub.s32 %s11, 1
        // Predicated region
        $region13: #{conv_wso.1} parent=11 // pred_check
          %p136 = pneg %p72
        $region14: #{conv_wso.1} parent=11 // pred_check_branch
          %138 = sbr.rel (%p136) target = $region16
        $region15: #{conv_wso.1} parent=11 // pred_region
          %140 = vsyncadd [#allocation3], 0
          %s142 = sshll.u32 %s1, 4
          %s143 = int_to_ptr.vmem [resolvable:$true] %s142
          %145 = dma.vmem_to_smem %s143, 16, [#allocation2], [#allocation3]
        $region16: #{conv_wso.1} parent=11 // pred_fallthru
          _
        // Predicated region
        $region17: #{conv_wso.1} parent=11 // pred_check
          %p146 = pneg %p93
        $region18: #{conv_wso.1} parent=11 // pred_check_branch
          %148 = sbr.rel (%p146) target = $region20
        $region19: #{conv_wso.1} parent=11 // pred_region
          %150 = vsyncadd [#allocation5], 0
          %s152 = sshll.u32 %s2, 4
          %s153 = int_to_ptr.vmem [resolvable:$true] %s152
          %155 = dma.vmem_to_smem %s153, 16, [#allocation4], [#allocation5]
        $region20: #{conv_wso.1} parent=11 // pred_fallthru
          _
      $region12: #{conv_wso.1} parent=5 // pred_fallthru
        _
      %p156 = scmp.lt.s32.totalorder %s11, 2
      // Predicated region
      $region21: #{conv_wso.1} parent=5 // pred_check
        %p157 = pneg %p156
      $region22: #{conv_wso.1} parent=5 // pred_check_branch
        %159 = sbr.rel (%p157) target = $region24
      $region23: #{conv_wso.1} parent=5 // pred_region
        // Predicated region
        $region25: #{conv_wso.1} parent=23 // pred_check
          %p160 = pneg %p45
        $region26: #{conv_wso.1} parent=23 // pred_check_branch
          %162 = sbr.rel (%p160) target = $region28
        $region27: #{conv_wso.1} parent=23 // pred_region
          %p163 = scmp.lt.s32.totalorder %s18, 1
          %s164 = scalar_select %p163, %s18, 1
          %p165 = scmp.lt.s32.totalorder %s19, 0
          %s166 = scalar_select %p165, %s19, 0
          %s167 = sadd.s32 %s166, %s164
          %s168 = smul.addr %s167, 2
          %s169 = scalar_lea.vmem %s0, %s168
        $region28: #{conv_wso.1} parent=23 // pred_fallthru
          _
      $region24: #{conv_wso.1} parent=5 // pred_fallthru
        _
      %p170 = scmp.le.s32.totalorder 1, %s11
      %p171 = scmp.lt.s32.totalorder %s11, 3
      %p172 = pnand %p170, %p171
      %p173 = pneg %p172
      // Predicated region
      $region29: #{conv_wso.1} parent=5 // pred_check
        _
      $region30: #{conv_wso.1} parent=5 // pred_check_branch
        %175 = sbr.rel (%p172) target = $region32
      $region31: #{conv_wso.1} parent=5 // pred_region
        %s176 = ssub.s32 %s11, 1
        // Predicated region
        $region33: #{conv_wso.1} parent=31 // pred_check
          %p177 = pneg %p72
        $region34: #{conv_wso.1} parent=31 // pred_check_branch
          %179 = sbr.rel (%p177) target = $region36
        $region35: #{conv_wso.1} parent=31 // pred_region
          %181 = dma.done [#allocation3], 16
        $region36: #{conv_wso.1} parent=31 // pred_fallthru
          _
        // Predicated region
        $region37: #{conv_wso.1} parent=31 // pred_check
          %p182 = pneg %p93
        $region38: #{conv_wso.1} parent=31 // pred_check_branch
          %184 = sbr.rel (%p182) target = $region40
        $region39: #{conv_wso.1} parent=31 // pred_region
          %186 = dma.done [#allocation5], 16
        $region40: #{conv_wso.1} parent=31 // pred_fallthru
          _
        %187 = sfence
        %p188 = scmp.lt.s32.totalorder %s20, 1
        %s189 = scalar_select %p188, %s20, 1
        %p190 = scmp.lt.s32.totalorder %s21, 0
        %s191 = scalar_select %p190, %s21, 0
        %s192 = sadd.s32 %s191, %s189
        %s193 = smul.addr %s192, 2
        %s194 = scalar_lea.vmem %s0, %s193
        %p195 = pneg %p51
        %p196 = pneg %p48
        %p197 = pneg %p72
        %p198 = pneg %p69
        %p199 = pneg %p93
        %p200 = pneg %p90
        %p201 = pneg %p121
        %p202 = pneg %p118
        %p203 = scmp.lt.s32.totalorder %s20, 1
        %s204 = scalar_select %p203, %s20, 1
        %p205 = scmp.lt.s32.totalorder %s21, 0
        %s206 = scalar_select %p205, %s21, 0
        %s207 = smul.addr %s204, 3
        %s208 = sadd.s32 %s206, %s207
        %s209 = smul.addr %s208, 2
        %s210 = scalar_lea.vmem %s3, %s209
        %p211 = scmp.lt.s32.totalorder %s20, 1
        %s212 = scalar_select %p211, %s20, 1
        %p213 = scmp.lt.s32.totalorder %s21, 0
        %s214 = scalar_select %p213, %s21, 0
        %s215 = sadd.s32 %s214, %s212
        %s216 = smul.addr %s215, 2
        %s217 = scalar_lea.vmem %s0, %s216
        %p218 = scmp.lt.s32.totalorder %s20, 1
        %s219 = scalar_select %p218, %s20, 1
        %p220 = scmp.lt.s32.totalorder %s21, 0
        %s221 = scalar_select %p220, %s21, 0
        %s222 = smul.addr %s219, 3
        %s223 = sadd.s32 %s221, %s222
        %s224 = smul.addr %s223, 2
        %s225 = scalar_lea.vmem %s3, %s224
        %v226 = vld [vmem:[%s217] sm:$0x3]
        %s227 = sld [smem:[#allocation2]]
        %v228 = vstv %s227
        %v229 = vmul.f32 %v226, %v228
        %s230 = sld [smem:[#allocation4]]
        %v231 = vstv %s230
        %v232 = vadd.f32 %v229, %v231
        %v233 = vxor.u32 %v232, 2147483648
        %v234 = vmul.f32 %v233, 1.442695
        %v235 = vpow.pop %v234
        %v236 = vadd.f32 %v235, 1.0
        %v237 = vrcp.pop %v236
        %v238 = vmul.f32 %v236, %v237
        %v239 = vsub.f32 1.0, %v238
        %v240 = vmul.f32 %v237, %v239
        %v241 = vadd.f32 %v237, %v240
        %vm242 = vweird.f32 %v236
        %vm243 = vweird.f32 %v237
        %vm244 = vmor %vm242, %vm243
        %v245 = vsel %vm244, %v237, %v241
        %v246 = vand.u32 2147483647, %v236
        %vm247 = vcmp.eq.f32.partialorder %v246, 8.507059e+37
        %v248 = vand.u32 %v236, 2147483648
        %v249 = vor.u32 1.1754944e-38, %v248
        %v250 = vsel %vm247, %v249, %v245
        %v251 = vmul.f32 1.0, %v250
        %v252 = vmul.f32 %v251, 255.0
        %253 = vst [vmem:[%s225] sm:$0x3] %v252
        %s254 = sld [smem:[#allocation2 + $0x1]]
        %v255 = vstv %s254
        %v256 = vmul.f32 %v226, %v255
        %s257 = sld [smem:[#allocation4 + $0x1]]
        %v258 = vstv %s257
        %v259 = vadd.f32 %v256, %v258
        %v260 = vxor.u32 %v259, 2147483648
        %v261 = vmul.f32 %v260, 1.442695
        %v262 = vpow.pop %v261
        %v263 = vadd.f32 %v262, 1.0
        %v264 = vrcp.pop %v263
        %v265 = vmul.f32 %v263, %v264
        %v266 = vsub.f32 1.0, %v265
        %v267 = vmul.f32 %v264, %v266
        %v268 = vadd.f32 %v264, %v267
        %vm269 = vweird.f32 %v263
        %vm270 = vweird.f32 %v264
        %vm271 = vmor %vm269, %vm270
        %v272 = vsel %vm271, %v264, %v268
        %v273 = vand.u32 2147483647, %v263
        %vm274 = vcmp.eq.f32.partialorder %v273, 8.507059e+37
        %v275 = vand.u32 %v263, 2147483648
        %v276 = vor.u32 1.1754944e-38, %v275
        %v277 = vsel %vm274, %v276, %v272
        %v278 = vmul.f32 1.0, %v277
        %v279 = vmul.f32 %v278, 255.0
        %s280 = scalar_lea.vmem %s225, 2
        %281 = vst [vmem:[%s280] sm:$0x3] %v279
        %s282 = sld [smem:[#allocation2 + $0x2]]
        %v283 = vstv %s282
        %v284 = vmul.f32 %v226, %v283
        %s285 = sld [smem:[#allocation4 + $0x2]]
        %v286 = vstv %s285
        %v287 = vadd.f32 %v284, %v286
        %v288 = vxor.u32 %v287, 2147483648
        %v289 = vmul.f32 %v288, 1.442695
        %v290 = vpow.pop %v289
        %v291 = vadd.f32 %v290, 1.0
        %v292 = vrcp.pop %v291
        %v293 = vmul.f32 %v291, %v292
        %v294 = vsub.f32 1.0, %v293
        %v295 = vmul.f32 %v292, %v294
        %v296 = vadd.f32 %v292, %v295
        %vm297 = vweird.f32 %v291
        %vm298 = vweird.f32 %v292
        %vm299 = vmor %vm297, %vm298
        %v300 = vsel %vm299, %v292, %v296
        %v301 = vand.u32 2147483647, %v291
        %vm302 = vcmp.eq.f32.partialorder %v301, 8.507059e+37
        %v303 = vand.u32 %v291, 2147483648
        %v304 = vor.u32 1.1754944e-38, %v303
        %v305 = vsel %vm302, %v304, %v300
        %v306 = vmul.f32 1.0, %v305
        %v307 = vmul.f32 %v306, 255.0
        %s308 = scalar_lea.vmem %s225, 4
        %309 = vst [vmem:[%s308] sm:$0x3] %v307
        %p310 = scmp.lt.s32.totalorder %s20, 1
        %s311 = scalar_select %p310, %s20, 1
        %p312 = scmp.lt.s32.totalorder %s21, 0
        %s313 = scalar_select %p312, %s21, 0
        %s314 = smul.addr %s311, 3
        %s315 = sadd.s32 %s313, %s314
        %s316 = smul.addr %s315, 2
        %s317 = scalar_lea.vmem %s3, %s316
        // Predicated region
        $region41: #{conv_wso.1} parent=31 // pred_check
          %p318 = pneg %p118
        $region42: #{conv_wso.1} parent=31 // pred_check_branch
          %320 = sbr.rel (%p318) target = $region44
        $region43: #{conv_wso.1} parent=31 // pred_region
          _
        $region44: #{conv_wso.1} parent=31 // pred_fallthru
          _
      $region32: #{conv_wso.1} parent=5 // pred_fallthru
        _
      %p321 = scmp.le.s32.totalorder 2, %s11
      // Predicated region
      $region45: #{conv_wso.1} parent=5 // pred_check
        %p322 = pneg %p321
      $region46: #{conv_wso.1} parent=5 // pred_check_branch
        %324 = sbr.rel (%p322) target = $region48
      $region47: #{conv_wso.1} parent=5 // pred_region
        %s325 = ssub.s32 %s11, 2
        // Predicated region
        $region49: #{conv_wso.1} parent=47 // pred_check
          %p326 = pneg %p124
        $region50: #{conv_wso.1} parent=47 // pred_check_branch
          %328 = sbr.rel (%p326) target = $region52
        $region51: #{conv_wso.1} parent=47 // pred_region
          %p329 = scmp.lt.s32.totalorder %s22, 1
          %s330 = scalar_select %p329, %s22, 1
          %p331 = scmp.lt.s32.totalorder %s23, 0
          %s332 = scalar_select %p331, %s23, 0
          %s333 = smul.addr %s330, 3
          %s334 = sadd.s32 %s332, %s333
          %s335 = smul.addr %s334, 2
          %s336 = scalar_lea.vmem %s3, %s335
        $region52: #{conv_wso.1} parent=47 // pred_fallthru
          _
      $region48: #{conv_wso.1} parent=5 // pred_fallthru
        _
    $region6: #{conv_wso.1} parent=1 // loop_footer
      %s15 = sadd.s32 1, %s11
    $region7: #{conv_wso.1} parent=1 // loop_footer_branch
      %10 = sbr.rel target = $region3
    $region8: #{conv_wso.1} parent=1 // loop_exit
      _
    %337 = vsyncpa [#allocation3], 1
    %s338 = scalar_lea.sflag [#allocation3], 1
    %339 = vsyncpa %s338, 1
    %340 = vsyncpa [#allocation5], 1

</llo_original>
